<compile_context>
chip_gen: v7x
topology: tpu7x:2x2x1
jax: 0.10.0
libtpu: 0.0.40
codegen_flags: <defaults>
</compile_context>

<pallas_src>
from functools import partial

import jax
import jax.numpy as jnp
from jax import lax
from jax.experimental import pallas as pl
from jax.experimental.pallas import tpu as pltpu

_LANE = 128
_ACC_ROWS = 16                  # sublane rows per accumulation chunk (2 vregs/channel)
_DEFAULT_BUDGET = 24 << 20      # double-buffered streamed-x footprint target (bytes)
_VMEM_LIMIT = 32 << 20          # explicit scoped-VMEM limit (safe on v5e/v6e/v7x)


def _classifier_kernel(x_ref, t_ref, wcomb_ref, bcomb_ref, bfc_ref,
                       out_ref, acc_ref, *, inv_hw, rows, acc_rows,
                       unroll_threshold):
    # x_ref    : (1, Cin, rows, lane)  current (batch-row, HW-tile) block
    # t_ref    : (B,)                  full t vector, resident in SMEM
    # wcomb_ref: (Cin, NC)             folded (1x1 conv) @ (fc) weight
    # bcomb_ref: (1, NC)               folded conv-bias @ fc weight
    # bfc_ref  : (1, NC)               fc bias
    # out_ref  : (1, 1, NC)            softmax probabilities for this sample
    # acc_ref  : (Cin, acc_rows, lane) per-vreg partial sums over HW (scratch)
    b = pl.program_id(0)
    h = pl.program_id(1)

    @pl.when(h == 0)
    def _init():
        acc_ref[...] = jnp.zeros_like(acc_ref)

    n_full = rows // acc_rows
    rem = rows % acc_rows

    def add_chunk(row0):
        chunk = x_ref[0, :, pl.ds(row0, acc_rows), :]          # (Cin, acc_rows, lane)
        acc_ref[...] += chunk.astype(jnp.float32)               # 2*Cin independent vadds

    if n_full > 0:
        if n_full <= unroll_threshold:
            for j in range(n_full):                              # short static unroll
                add_chunk(j * acc_rows)
        else:
            def body(j, carry):                                  # big tiles: fori + unroll
                off = pl.multiple_of(j * acc_rows, acc_rows)
                add_chunk(off)
                return carry
            lax.fori_loop(0, n_full, body, 0, unroll=8)

    if rem:                                                      # tail (static slice)
        tail = x_ref[0, :, pl.ds(n_full * acc_rows, rem), :]
        acc_ref[:, 0:rem, :] += tail.astype(jnp.float32)

    # ---- finalize once per sample, on the last HW tile ---------------------
    @pl.when(h == pl.num_programs(1) - 1)
    def _finalize():
        # mean over HW: one lane reduce + one sublane reduce, kept as a column
        lane_sum = jnp.sum(acc_ref[...], axis=2)                 # (Cin, acc_rows)
        pooled = jnp.sum(lane_sum, axis=1, keepdims=True) * inv_hw   # (Cin, 1)

        # folded (score_net 1x1 conv) -> (fc) projection, pure VPU (no MXU)
        lin = jnp.sum(pooled * wcomb_ref[...], axis=0, keepdims=True)    # (1, NC)

        # per-sample time scaling exp(-t) applied to everything upstream of fc bias
        scale = jnp.exp(jnp.full((1, 1), -t_ref[b], dtype=jnp.float32))
        logits = scale * (lin + bcomb_ref[...]) + bfc_ref[...]           # (1, NC)

        # softmax over classes (exact normalization -> probs sum to 1)
        m = jnp.max(logits, axis=-1, keepdims=True)
        e = jnp.exp(logits - m)
        probs = e / jnp.sum(e, axis=-1, keepdims=True)
        out_ref[0] = probs.astype(out_ref.dtype)


def _pick_rows_per_block(n_rows, cin, lane, itemsize, budget_bytes):
    """Largest row count S (multiple of 8 dividing n_rows, or n_rows itself)
    whose double-buffered streamed block 2*Cin*S*lane*itemsize fits budget."""
    max_rows = max(1, budget_bytes // (2 * cin * lane * itemsize))
    if n_rows <= max_rows:
        return n_rows
    best = 0
    s = 8
    while s <= max_rows:
        if n_rows % s == 0:
            best = s
        s += 8
    return best if best > 0 else n_rows


def classifier_forward(x_nchw, t, params, *, rows_per_block=None,
                       budget_bytes=_DEFAULT_BUDGET, unroll_threshold=16):
    """x_nchw: (B, Cin, H, W), t: (B,) -> (B, NC) class probabilities."""
    B, Cin, H, W = x_nchw.shape
    HW = H * W
    NC = params["w_fc"].shape[0]

    # Keep native narrow dtype if possible (no wrapper-side HBM copy); the
    # kernel upcasts each chunk and always accumulates in f32.
    if x_nchw.dtype not in (jnp.float32, jnp.bfloat16):
        x_nchw = x_nchw.astype(jnp.float32)

    lane = _LANE if HW % _LANE == 0 else HW
    n_rows = HW // lane
    x = x_nchw.reshape(B, Cin, n_rows, lane)          # free contiguous view of NCHW
    t1 = t.reshape(B).astype(jnp.float32)

    w_sn = jnp.asarray(params["w_sn"], jnp.float32)   # (3, Cin)
    b_sn = jnp.asarray(params["b_sn"], jnp.float32)   # (3,)
    w_fc = jnp.asarray(params["w_fc"], jnp.float32)   # (NC, 3)
    b_fc = jnp.asarray(params["b_fc"], jnp.float32)   # (NC,)
    # Fold the two tiny linear maps (exact linear-algebra identity):
    #   logits = exp(-t) * (mean(x) @ w_sn.T @ w_fc.T + b_sn @ w_fc.T) + b_fc
    w_comb = w_sn.T @ w_fc.T                          # (Cin, NC)
    b_comb = (b_sn @ w_fc.T).reshape(1, NC)           # (1, NC)
    bfc = b_fc.reshape(1, NC)                         # (1, NC)

    if rows_per_block is None:
        rows_per_block = _pick_rows_per_block(n_rows, Cin, lane,
                                              x.dtype.itemsize, budget_bytes)
    if n_rows % rows_per_block != 0:
        raise ValueError("rows_per_block must divide HW // 128")
    if rows_per_block != n_rows and rows_per_block % 8 != 0:
        raise ValueError("rows_per_block must be a multiple of 8 (or the full extent)")
    n_hw = n_rows // rows_per_block
    acc_rows = min(_ACC_ROWS, rows_per_block)

    kernel = partial(_classifier_kernel,
                     inv_hw=1.0 / float(HW), rows=rows_per_block,
                     acc_rows=acc_rows, unroll_threshold=unroll_threshold)

    out = pl.pallas_call(
        kernel,
        out_shape=jax.ShapeDtypeStruct((B, 1, NC), jnp.float32),
        grid=(B, n_hw),
        in_specs=[
            pl.BlockSpec((1, Cin, rows_per_block, lane),
                         lambda b, h: (b, 0, h, 0)),                   # x (streamed)
            pl.BlockSpec(memory_space=pltpu.MemorySpace.SMEM),         # t (scalar path)
            pl.BlockSpec((Cin, NC), lambda b, h: (0, 0)),              # w_comb (resident)
            pl.BlockSpec((1, NC), lambda b, h: (0, 0)),                # b_comb (resident)
            pl.BlockSpec((1, NC), lambda b, h: (0, 0)),                # b_fc  (resident)
        ],
        out_specs=pl.BlockSpec((1, 1, NC), lambda b, h: (b, 0, 0)),
        scratch_shapes=[pltpu.VMEM((Cin, acc_rows, lane), jnp.float32)],
        compiler_params=pltpu.CompilerParams(
            dimension_semantics=("parallel", "arbitrary"),
            vmem_limit_bytes=_VMEM_LIMIT),
    )(x, t1, w_comb, b_comb, bfc)

    return out.reshape(B, NC)


def _reference_forward(x_nchw, t, params):
    # Plain-JAX reference with identical semantics (for verification).
    scale = jnp.exp(-t)[:, None, None, None]
    feat = jnp.einsum("bchw,oc->bohw", x_nchw.astype(jnp.float32), params["w_sn"]) \
        + params["b_sn"][None, :, None, None]
    feat = feat * scale                                   # score_net(x, t): (B, 3, H, W)
    pooled = jnp.mean(feat, axis=(2, 3))                  # (B, 3)
    logits = pooled @ params["w_fc"].T + params["b_fc"]   # (B, NC)
    return jax.nn.softmax(logits, axis=1)


if __name__ == "__main__":
    B, Cin, H, W = 2, 4, 16, 16
    num_classes = 5

    key = jax.random.PRNGKey(0)
    kx, kt, k1, k2, k3, k4, kx2 = jax.random.split(key, 7)

    x = jax.random.normal(kx, (B, Cin, H, W), dtype=jnp.float32)
    t = jax.random.uniform(kt, (B,), dtype=jnp.float32)

    # Deterministic synthetic parameters (shapes implied by the module):
    #   score_net 1x1 conv: (3, Cin) weight + (3,) bias
    #   fc (nn.Linear(3, num_classes)): (num_classes, 3) weight + (num_classes,) bias
    params = {
        "w_sn": 0.1 * jax.random.normal(k1, (3, Cin), dtype=jnp.float32),
        "b_sn": 0.1 * jax.random.normal(k2, (3,), dtype=jnp.float32),
        "w_fc": 0.1 * jax.random.normal(k3, (num_classes, 3), dtype=jnp.float32),
        "b_fc": 0.1 * jax.random.normal(k4, (num_classes,), dtype=jnp.float32),
    }

    # --- test 1: module-sized input (16x16), auto tiling (single HW step) ---
    ref = _reference_forward(x, t, params)
    probs = classifier_forward(x, t, params)
    jax.block_until_ready(probs)
    assert probs.shape == (B, num_classes)
    assert jnp.allclose(jnp.sum(probs, axis=1), 1.0, atol=1e-5)
    assert jnp.allclose(probs, ref, atol=1e-3, rtol=1e-3)

    # --- test 2: larger spatial, multi-step HW reduction (accumulate+finalize) ---
    x2 = jax.random.normal(kx2, (B, Cin, 64, 64), dtype=jnp.float32)
    ref2 = _reference_forward(x2, t, params)
    probs2 = classifier_forward(x2, t, params, rows_per_block=8)   # grid (B, 4)
    jax.block_until_ready(probs2)
    assert jnp.allclose(jnp.sum(probs2, axis=1), 1.0, atol=1e-5)
    assert jnp.allclose(probs2, ref2, atol=1e-3, rtol=1e-3)

    # --- test 3: exercise the fori_loop chunked-accumulation path ---
    probs3 = classifier_forward(x2, t, params, rows_per_block=32, unroll_threshold=0)
    jax.block_until_ready(probs3)
    assert jnp.allclose(jnp.sum(probs3, axis=1), 1.0, atol=1e-5)
    assert jnp.allclose(probs3, ref2, atol=1e-3, rtol=1e-3)

    print("KERNEL_OK")
</pallas_src>

<mosaic_0001>
module attributes {stable_mosaic.version = 11 : i64} {
  func.func @_classifier_kernel(%arg0: i32, %arg1: i32, %arg2: memref<1x4x2x128xf32, #tpu.memory_space<vmem>>, %arg3: memref<2xf32, #tpu.memory_space<smem>>, %arg4: memref<4x5xf32, #tpu.memory_space<vmem>>, %arg5: memref<1x5xf32, #tpu.memory_space<vmem>>, %arg6: memref<1x5xf32, #tpu.memory_space<vmem>>, %arg7: memref<1x1x5xf32, #tpu.memory_space<vmem>>, %arg8: memref<4x2x128xf32, #tpu.memory_space<vmem>>) attributes {dimension_semantics = [#tpu.dimension_semantics<parallel>, #tpu.dimension_semantics<arbitrary>], iteration_bounds = array<i64: 2, 1>, scalar_prefetch = 0 : i64, scratch_operands = 1 : i64, tpu.core_type = #tpu.core_type<tc>, window_params = [{transform_indices = @transform_0, window_bounds = array<i64: 1, 4, 2, 128>}, {transform_indices = @transform_1, window_bounds = array<i64: 2>}, {pipeline_mode = #tpu.pipeline_mode<synchronous>, transform_indices = @transform_2, window_bounds = array<i64: 4, 5>}, {pipeline_mode = #tpu.pipeline_mode<synchronous>, transform_indices = @transform_3, window_bounds = array<i64: 1, 5>}, {pipeline_mode = #tpu.pipeline_mode<synchronous>, transform_indices = @transform_4, window_bounds = array<i64: 1, 5>}, {transform_indices = @transform_5, window_bounds = array<i64: 1, 1, 5>}]} {
    %c0_i32 = arith.constant 0 : i32
    %0 = arith.cmpi eq, %arg1, %c0_i32 : i32
    %1 = arith.extui %0 : i1 to i32
    %c0_i32_0 = arith.constant 0 : i32
    %2 = arith.cmpi ne, %1, %c0_i32_0 : i32
    scf.if %2 {
      %cst = arith.constant 0.000000e+00 : f32
      %11 = vector.broadcast %cst : f32 to vector<4x2x128xf32>
      %c0_12 = arith.constant 0 : index
      %c0_13 = arith.constant 0 : index
      %c0_14 = arith.constant 0 : index
      %12 = vector.load %arg8[%c0_12, %c0_13, %c0_14] : memref<4x2x128xf32, #tpu.memory_space<vmem>>, vector<4x2x128xf32>
      tpu.vector_store %arg8[%c0_12, %c0_13, %c0_14], %11 {strides = array<i32>} : memref<4x2x128xf32, #tpu.memory_space<vmem>>, vector<4x2x128xf32>,
    } else {
    }
    %c0 = arith.constant 0 : index
    %c0_1 = arith.constant 0 : index
    %c0_2 = arith.constant 0 : index
    %c0_3 = arith.constant 0 : index
    %3 = vector.load %arg2[%c0, %c0_1, %c0_2, %c0_3] : memref<1x4x2x128xf32, #tpu.memory_space<vmem>>, vector<1x4x2x128xf32>
    %4 = vector.shape_cast %3 : vector<1x4x2x128xf32> to vector<4x2x128xf32>
    %c0_4 = arith.constant 0 : index
    %c0_5 = arith.constant 0 : index
    %c0_6 = arith.constant 0 : index
    %5 = vector.load %arg8[%c0_4, %c0_5, %c0_6] : memref<4x2x128xf32, #tpu.memory_space<vmem>>, vector<4x2x128xf32>
    %6 = arith.addf %5, %4 : vector<4x2x128xf32>
    %c0_7 = arith.constant 0 : index
    %c0_8 = arith.constant 0 : index
    %c0_9 = arith.constant 0 : index
    %7 = vector.load %arg8[%c0_7, %c0_8, %c0_9] : memref<4x2x128xf32, #tpu.memory_space<vmem>>, vector<4x2x128xf32>
    tpu.vector_store %arg8[%c0_7, %c0_8, %c0_9], %6 {strides = array<i32>} : memref<4x2x128xf32, #tpu.memory_space<vmem>>, vector<4x2x128xf32>,
    %c0_i32_10 = arith.constant 0 : i32
    %8 = arith.cmpi eq, %arg1, %c0_i32_10 : i32
    %9 = arith.extui %8 : i1 to i32
    %c0_i32_11 = arith.constant 0 : i32
    %10 = arith.cmpi ne, %9, %c0_i32_11 : i32
    scf.if %10 {
      %c0_12 = arith.constant 0 : index
      %c0_13 = arith.constant 0 : index
      %c0_14 = arith.constant 0 : index
      %11 = vector.load %arg8[%c0_12, %c0_13, %c0_14] : memref<4x2x128xf32, #tpu.memory_space<vmem>>, vector<4x2x128xf32>
      %cst = arith.constant dense<0.000000e+00> : vector<4x2xf32>
      %12 = vector.multi_reduction <add>, %11, %cst [2] : vector<4x2x128xf32> to vector<4x2xf32>
      %cst_15 = arith.constant dense<0.000000e+00> : vector<4xf32>
      %13 = vector.multi_reduction <add>, %12, %cst_15 [1] : vector<4x2xf32> to vector<4xf32>
      %14 = vector.shape_cast %13 : vector<4xf32> to vector<4x1xf32>
      %cst_16 = arith.constant 3.906250e-03 : f32
      %15 = vector.broadcast %cst_16 : f32 to vector<4x1xf32>
      %16 = arith.mulf %14, %15 : vector<4x1xf32>
      %c0_17 = arith.constant 0 : index
      %c0_18 = arith.constant 0 : index
      %17 = vector.load %arg4[%c0_17, %c0_18] : memref<4x5xf32, #tpu.memory_space<vmem>>, vector<4x5xf32>
      %18 = vector.broadcast %16 : vector<4x1xf32> to vector<4x5xf32>
      %19 = arith.mulf %18, %17 : vector<4x5xf32>
      %cst_19 = arith.constant dense<0.000000e+00> : vector<5xf32>
      %20 = vector.multi_reduction <add>, %19, %cst_19 [0] : vector<4x5xf32> to vector<5xf32>
      %21 = vector.shape_cast %20 : vector<5xf32> to vector<1x5xf32>
      %22 = arith.index_cast %arg0 : i32 to index
      %23 = memref.load %arg3[%22] : memref<2xf32, #tpu.memory_space<smem>>
      %cst_20 = arith.constant 0.000000e+00 : f32
      %24 = arith.subf %cst_20, %23 : f32
      %25 = vector.broadcast %24 : f32 to vector<1x1xf32>
      %26 = math.exp %25 : vector<1x1xf32>
      %c0_21 = arith.constant 0 : index
      %c0_22 = arith.constant 0 : index
      %27 = vector.load %arg5[%c0_21, %c0_22] : memref<1x5xf32, #tpu.memory_space<vmem>>, vector<1x5xf32>
      %28 = arith.addf %21, %27 : vector<1x5xf32>
      %29 = vector.broadcast %26 : vector<1x1xf32> to vector<1x5xf32>
      %30 = arith.mulf %29, %28 : vector<1x5xf32>
      %c0_23 = arith.constant 0 : index
      %c0_24 = arith.constant 0 : index
      %31 = vector.load %arg6[%c0_23, %c0_24] : memref<1x5xf32, #tpu.memory_space<vmem>>, vector<1x5xf32>
      %32 = arith.addf %30, %31 : vector<1x5xf32>
      %cst_25 = arith.constant dense<0xFF800000> : vector<1xf32>
      %33 = vector.multi_reduction <maximumf>, %32, %cst_25 [1] : vector<1x5xf32> to vector<1xf32>
      %34 = vector.shape_cast %33 : vector<1xf32> to vector<1x1xf32>
      %35 = vector.broadcast %34 : vector<1x1xf32> to vector<1x5xf32>
      %36 = arith.subf %32, %35 : vector<1x5xf32>
      %37 = math.exp %36 : vector<1x5xf32>
      %cst_26 = arith.constant dense<0.000000e+00> : vector<1xf32>
      %38 = vector.multi_reduction <add>, %37, %cst_26 [1] : vector<1x5xf32> to vector<1xf32>
      %39 = vector.shape_cast %38 : vector<1xf32> to vector<1x1xf32>
      %40 = vector.broadcast %39 : vector<1x1xf32> to vector<1x5xf32>
      %41 = arith.divf %37, %40 : vector<1x5xf32>
      %c0_27 = arith.constant 0 : index
      %c0_28 = arith.constant 0 : index
      %c0_29 = arith.constant 0 : index
      %42 = vector.load %arg7[%c0_27, %c0_28, %c0_29] : memref<1x1x5xf32, #tpu.memory_space<vmem>>, vector<1x1x5xf32>
      %43 = vector.shape_cast %42 : vector<1x1x5xf32> to vector<1x5xf32>
      %44 = vector.shape_cast %41 : vector<1x5xf32> to vector<1x1x5xf32>
      tpu.vector_store %arg7[%c0_27, %c0_28, %c0_29], %44 {strides = array<i32>} : memref<1x1x5xf32, #tpu.memory_space<vmem>>, vector<1x1x5xf32>,
    } else {
    }
    return
  }
  func.func @transform_0(%arg0: i32, %arg1: i32) -> (i32, i32, i32, i32) {
    %c0_i32 = arith.constant 0 : i32
    %c0_i32_0 = arith.constant 0 : i32
    %c0_i32_1 = arith.constant 0 : i32
    return %arg0, %c0_i32, %arg1, %c0_i32_0 : i32, i32, i32, i32
  }
  func.func @transform_1(%arg0: i32, %arg1: i32) -> i32 {
    %c0_i32 = arith.constant 0 : i32
    %c0_i32_0 = arith.constant 0 : i32
    return %c0_i32 : i32
  }
  func.func @transform_2(%arg0: i32, %arg1: i32) -> (i32, i32) {
    %c0_i32 = arith.constant 0 : i32
    %c0_i32_0 = arith.constant 0 : i32
    %c0_i32_1 = arith.constant 0 : i32
    return %c0_i32, %c0_i32_0 : i32, i32
  }
  func.func @transform_3(%arg0: i32, %arg1: i32) -> (i32, i32) {
    %c0_i32 = arith.constant 0 : i32
    %c0_i32_0 = arith.constant 0 : i32
    %c0_i32_1 = arith.constant 0 : i32
    return %c0_i32, %c0_i32_0 : i32, i32
  }
  func.func @transform_4(%arg0: i32, %arg1: i32) -> (i32, i32) {
    %c0_i32 = arith.constant 0 : i32
    %c0_i32_0 = arith.constant 0 : i32
    %c0_i32_1 = arith.constant 0 : i32
    return %c0_i32, %c0_i32_0 : i32, i32
  }
  func.func @transform_5(%arg0: i32, %arg1: i32) -> (i32, i32, i32) {
    %c0_i32 = arith.constant 0 : i32
    %c0_i32_0 = arith.constant 0 : i32
    %c0_i32_1 = arith.constant 0 : i32
    return %arg0, %c0_i32, %c0_i32_0 : i32, i32, i32
  }
}

</mosaic_0001>

<llo_original>
// kernel: tpu_custom_call.1
$region0: #{tpu_custom_call.1}
  #allocation0 [shape = 'u32[]', space=smem, size = 0x4, offset = 0x4, fixed_abs, tag = 'smem constant byte address 0x4 - core index']
  #allocation1 [shape = 'u32[144,128]{1,0:T(1,128)}', space=vmem, size = 0x12000, scoped, tag = 'internal scratch']
  #allocation2 [shape = 'f32[4,2,128]{2,1,0:T(2,128)}', space=vmem, size = 0x1000, scoped, tag = 'scratch operand']
  %s0 = inlined_call_operand.hbm [shape: f32[2,4,2,128], index: 0, kind: input, shape index: {}]
  %s1 = inlined_call_operand.vmem [shape: f32[2], index: 1, kind: input, shape index: {}]
  %s2 = inlined_call_operand.vmem [shape: f32[4,5], index: 2, kind: input, shape index: {}]
  %s3 = inlined_call_operand.vmem [shape: f32[1,5], index: 3, kind: input, shape index: {}]
  %s4 = inlined_call_operand.vmem [shape: f32[1,5], index: 4, kind: input, shape index: {}]
  %s5 = inlined_call_operand.hbm [shape: f32[2,1,5], index: 5, kind: output, shape index: {}]
  %s6 = sld [smem:[#allocation0]]
  $region69: #{tpu_custom_call.1} parent=0
    _
  %s8 = ssub.s32 1, %s6
  %s9 = scalar_select 0, %s8, %s6
  $region1: #{tpu_custom_call.1} parent=0
    #allocation3 [shape = 'u8[8192]{0}', space=vmem, size = 0x2000, scoped, tag = 'input window, operand 0']
    #allocation4 [shape = 's32[2]{0}', space=sflag, size = 0x8, scoped, tag = 'scoped memory for tpu_custom_call.1']
    #allocation5 [shape = 's32[2]{0}', space=sflag, size = 0x8, scoped, tag = 'scoped memory for tpu_custom_call.1']
    #allocation6 [shape = 's32[2]{0}', space=sflag, size = 0x8, scoped, tag = 'scoped memory for tpu_custom_call.1']
    #allocation7 [shape = 'u8[512]{0}', space=smem, size = 0x200, scoped, tag = 'input window, operand 1, single buffered']
    #allocation8 [shape = 'u8[1024]{0}', space=vmem, size = 0x400, scoped, tag = 'output window, operand 0']
    %10 = vsyncpa [#allocation4], 0
    %s11 = scalar_lea.sflag [#allocation4], 1
    %12 = vsyncpa %s11, 0
    %13 = vsyncpa [#allocation6], 0
    %14 = vsyncpa [#allocation5], 0
    %s15 = scalar_lea.sflag [#allocation5], 1
    %16 = vsyncpa %s15, 0
    loop: start=0, step=1, limit=4
    $region2: #{tpu_custom_call.1} parent=1 // loop_pre_header
      _
    $region3: #{tpu_custom_call.1} parent=1 // loop_header
      %s18 = sphi 0, %s22
      %p19 = scmp.ge.s32.totalorder %s18, 4
      %s25 = sphi 0, %s37
      %s26 = sphi 0, %s33
      %s27 = sphi 0, %s25
      %s28 = sphi 0, %s26
      %s29 = sphi 0, %s27
      %s30 = sphi 0, %s28
      %s42 = sphi 0, %s44
      %s45 = sphi 0, %s42
      %s46 = sphi 0, %s45
      %s62 = sphi 0, %s46
      %s66 = sphi 0, %s66
      %s68 = sphi 0, %s66
      %s69 = sphi 0, %s68
      %s83 = sphi 0, %s69
      %s87 = sphi 0, %s87
      %s89 = sphi 0, %s87
      %s90 = sphi 0, %s89
      %s104 = sphi 0, %s90
      %s108 = sphi 0, %s108
      %s110 = sphi 0, %s108
      %s111 = sphi 0, %s110
      %s125 = sphi 0, %s111
      %s129 = sphi 0, %s129
      %s131 = sphi 0, %s129
      %s132 = sphi 0, %s131
      %s146 = sphi 0, %s132
      %s152 = sphi 0, %s154
      %s155 = sphi 0, %s152
      %s156 = sphi 0, %s155
      %s172 = sphi 0, %s156
    $region4: #{tpu_custom_call.1} parent=1 // loop_header_branch
      %21 = sbr.rel (%p19) target = $region8
    $region5: #{tpu_custom_call.1} parent=1 // loop_body
      %s23 = ssub.s32 %s18, 1
      %s24 = ssub.s32 %s18, 2
      %s31 = sadd.s32 1, %s26
      %p32 = scmp.ge.s32.totalorder %s31, 1
      %s33 = scalar_select %p32, 0, %s31
      %s34 = sadd.s32 1, %s25
      %s35 = scalar_select %p32, %s34, %s25
      %p36 = scmp.ge.s32.totalorder %s35, 2
      %s37 = scalar_select %p36, 0, %s35
      %s38 = ssub.s32 %s25, %s37
      %s39 = ssub.s32 %s26, %s33
      %s40 = sor.u32 %s38, %s39
      %p41 = scmp.eq.s32.totalorder %s40, 0
      %s43 = sadd.s32 %s42, 1
      %s44 = scalar_select %p41, %s42, %s43
      %p47 = pneg %p41
      %p48 = scmp.eq.s32.totalorder %s18, 1
      %p49 = por %p47, %p48
      %p50 = scmp.ne.s32.totalorder %s42, %s45
      %p51 = scmp.eq.s32.totalorder %s18, 0
      %p52 = por %p50, %p51
      %p53 = scmp.ne.s32.totalorder %s42, %s45
      %p54 = scmp.eq.s32.totalorder %s23, 1
      %p55 = por %p53, %p54
      %p56 = scmp.ne.s32.totalorder %s45, %s46
      %p57 = scmp.eq.s32.totalorder %s23, 0
      %p58 = por %p56, %p57
      %p59 = scmp.ne.s32.totalorder %s45, %s46
      %p60 = scmp.eq.s32.totalorder %s24, 1
      %p61 = por %p59, %p60
      %p63 = scmp.ne.s32.totalorder %s46, %s62
      %p64 = scmp.eq.s32.totalorder %s24, 0
      %p65 = por %p63, %p64
      %s67 = sadd.s32 %s66, 1
      %p70 = scmp.eq.s32.totalorder %s18, 1
      %p71 = scmp.ne.s32.totalorder %s66, %s68
      %p72 = scmp.eq.s32.totalorder %s18, 0
      %p73 = por %p71, %p72
      %p74 = scmp.ne.s32.totalorder %s66, %s68
      %p75 = scmp.eq.s32.totalorder %s23, 1
      %p76 = por %p74, %p75
      %p77 = scmp.ne.s32.totalorder %s68, %s69
      %p78 = scmp.eq.s32.totalorder %s23, 0
      %p79 = por %p77, %p78
      %p80 = scmp.ne.s32.totalorder %s68, %s69
      %p81 = scmp.eq.s32.totalorder %s24, 1
      %p82 = por %p80, %p81
      %p84 = scmp.ne.s32.totalorder %s69, %s83
      %p85 = scmp.eq.s32.totalorder %s24, 0
      %p86 = por %p84, %p85
      %s88 = sadd.s32 %s87, 1
      %p91 = scmp.eq.s32.totalorder %s18, 1
      %p92 = scmp.ne.s32.totalorder %s87, %s89
      %p93 = scmp.eq.s32.totalorder %s18, 0
      %p94 = por %p92, %p93
      %p95 = scmp.ne.s32.totalorder %s87, %s89
      %p96 = scmp.eq.s32.totalorder %s23, 1
      %p97 = por %p95, %p96
      %p98 = scmp.ne.s32.totalorder %s89, %s90
      %p99 = scmp.eq.s32.totalorder %s23, 0
      %p100 = por %p98, %p99
      %p101 = scmp.ne.s32.totalorder %s89, %s90
      %p102 = scmp.eq.s32.totalorder %s24, 1
      %p103 = por %p101, %p102
      %p105 = scmp.ne.s32.totalorder %s90, %s104
      %p106 = scmp.eq.s32.totalorder %s24, 0
      %p107 = por %p105, %p106
      %s109 = sadd.s32 %s108, 1
      %p112 = scmp.eq.s32.totalorder %s18, 1
      %p113 = scmp.ne.s32.totalorder %s108, %s110
      %p114 = scmp.eq.s32.totalorder %s18, 0
      %p115 = por %p113, %p114
      %p116 = scmp.ne.s32.totalorder %s108, %s110
      %p117 = scmp.eq.s32.totalorder %s23, 1
      %p118 = por %p116, %p117
      %p119 = scmp.ne.s32.totalorder %s110, %s111
      %p120 = scmp.eq.s32.totalorder %s23, 0
      %p121 = por %p119, %p120
      %p122 = scmp.ne.s32.totalorder %s110, %s111
      %p123 = scmp.eq.s32.totalorder %s24, 1
      %p124 = por %p122, %p123
      %p126 = scmp.ne.s32.totalorder %s111, %s125
      %p127 = scmp.eq.s32.totalorder %s24, 0
      %p128 = por %p126, %p127
      %s130 = sadd.s32 %s129, 1
      %p133 = scmp.eq.s32.totalorder %s18, 1
      %p134 = scmp.ne.s32.totalorder %s129, %s131
      %p135 = scmp.eq.s32.totalorder %s18, 0
      %p136 = por %p134, %p135
      %p137 = scmp.ne.s32.totalorder %s129, %s131
      %p138 = scmp.eq.s32.totalorder %s23, 1
      %p139 = por %p137, %p138
      %p140 = scmp.ne.s32.totalorder %s131, %s132
      %p141 = scmp.eq.s32.totalorder %s23, 0
      %p142 = por %p140, %p141
      %p143 = scmp.ne.s32.totalorder %s131, %s132
      %p144 = scmp.eq.s32.totalorder %s24, 1
      %p145 = por %p143, %p144
      %p147 = scmp.ne.s32.totalorder %s132, %s146
      %p148 = scmp.eq.s32.totalorder %s24, 0
      %p149 = por %p147, %p148
      %s150 = ssub.s32 %s25, %s37
      %p151 = scmp.eq.s32.totalorder %s150, 0
      %s153 = sadd.s32 %s152, 1
      %s154 = scalar_select %p151, %s152, %s153
      %p157 = pneg %p151
      %p158 = scmp.eq.s32.totalorder %s18, 1
      %p159 = por %p157, %p158
      %p160 = scmp.ne.s32.totalorder %s152, %s155
      %p161 = scmp.eq.s32.totalorder %s18, 0
      %p162 = por %p160, %p161
      %p163 = scmp.ne.s32.totalorder %s152, %s155
      %p164 = scmp.eq.s32.totalorder %s23, 1
      %p165 = por %p163, %p164
      %p166 = scmp.ne.s32.totalorder %s155, %s156
      %p167 = scmp.eq.s32.totalorder %s23, 0
      %p168 = por %p166, %p167
      %p169 = scmp.ne.s32.totalorder %s155, %s156
      %p170 = scmp.eq.s32.totalorder %s24, 1
      %p171 = por %p169, %p170
      %p173 = scmp.ne.s32.totalorder %s156, %s172
      %p174 = scmp.eq.s32.totalorder %s24, 0
      %p175 = por %p173, %p174
      %p176 = scmp.le.s32.totalorder 1, %s18
      %p177 = scmp.lt.s32.totalorder %s18, 3
      %p178 = pnand %p176, %p177
      %p179 = pneg %p178
      // Predicated region
      $region9: #{tpu_custom_call.1} parent=5 // pred_check
        _
      $region10: #{tpu_custom_call.1} parent=5 // pred_check_branch
        %181 = sbr.rel (%p178) target = $region12
      $region11: #{tpu_custom_call.1} parent=5 // pred_region
        %s182 = ssub.s32 %s18, 1
        // Predicated region
        $region13: #{tpu_custom_call.1} parent=11 // pred_check
          %p183 = pneg %p79
        $region14: #{tpu_custom_call.1} parent=11 // pred_check_branch
          %185 = sbr.rel (%p183) target = $region16
        $region15: #{tpu_custom_call.1} parent=11 // pred_region
          %s187 = ssub.s32 16, 16
          %188 = vsyncadd [#allocation6], %s187
          %s190 = sshll.u32 %s1, 4
          %s191 = int_to_ptr.vmem [resolvable:$true] %s190
          %193 = dma.vmem_to_smem %s191, 16, [#allocation7], [#allocation6]
        $region16: #{tpu_custom_call.1} parent=11 // pred_fallthru
          _
        // Predicated region
        $region17: #{tpu_custom_call.1} parent=11 // pred_check
          %p194 = pneg %p100
        $region18: #{tpu_custom_call.1} parent=11 // pred_check_branch
          %196 = sbr.rel (%p194) target = $region20
        $region19: #{tpu_custom_call.1} parent=11 // pred_region
          _
        $region20: #{tpu_custom_call.1} parent=11 // pred_fallthru
          _
        // Predicated region
        $region21: #{tpu_custom_call.1} parent=11 // pred_check
          %p197 = pneg %p121
        $region22: #{tpu_custom_call.1} parent=11 // pred_check_branch
          %199 = sbr.rel (%p197) target = $region24
        $region23: #{tpu_custom_call.1} parent=11 // pred_region
          _
        $region24: #{tpu_custom_call.1} parent=11 // pred_fallthru
          _
        // Predicated region
        $region25: #{tpu_custom_call.1} parent=11 // pred_check
          %p200 = pneg %p142
        $region26: #{tpu_custom_call.1} parent=11 // pred_check_branch
          %202 = sbr.rel (%p200) target = $region28
        $region27: #{tpu_custom_call.1} parent=11 // pred_region
          _
        $region28: #{tpu_custom_call.1} parent=11 // pred_fallthru
          _
      $region12: #{tpu_custom_call.1} parent=5 // pred_fallthru
        _
      %p203 = scmp.lt.s32.totalorder %s18, 2
      // Predicated region
      $region29: #{tpu_custom_call.1} parent=5 // pred_check
        %p204 = pneg %p203
      $region30: #{tpu_custom_call.1} parent=5 // pred_check_branch
        %206 = sbr.rel (%p204) target = $region32
      $region31: #{tpu_custom_call.1} parent=5 // pred_region
        // Predicated region
        $region33: #{tpu_custom_call.1} parent=31 // pred_check
          %p207 = pneg %p52
        $region34: #{tpu_custom_call.1} parent=31 // pred_check_branch
          %209 = sbr.rel (%p207) target = $region36
        $region35: #{tpu_custom_call.1} parent=31 // pred_region
          %s210 = sand.u32 %s42, 1
          %s211 = scalar_lea.sflag [#allocation4], %s210
          %s212 = sand.u32 %s42, 1
          %s213 = smul.addr %s212, 8
          %s214 = scalar_lea.vmem [#allocation3], %s213
          %s216 = ssub.s32 128, 128
          %217 = vsyncadd %s211, %s216
          %s218 = smul.addr %s25, 4
          %s219 = sadd.s32 %s26, %s218
          %s220 = smul.addr %s219, 32
          %s221 = scalar_lea.hbm %s0, %s220
          %s222 = sshll.u32 %s214, 4
          %s223 = int_to_ptr.vmem [resolvable:$true] %s222
          %228 = dma.hbm_to_vmem [thread:$0]  %s221, 128, %s223, %s211, 32, 32, 2
        $region36: #{tpu_custom_call.1} parent=31 // pred_fallthru
          _
      $region32: #{tpu_custom_call.1} parent=5 // pred_fallthru
        _
      %p229 = scmp.le.s32.totalorder 1, %s18
      %p230 = scmp.lt.s32.totalorder %s18, 3
      %p231 = pnand %p229, %p230
      %p232 = pneg %p231
      // Predicated region
      $region37: #{tpu_custom_call.1} parent=5 // pred_check
        _
      $region38: #{tpu_custom_call.1} parent=5 // pred_check_branch
        %234 = sbr.rel (%p231) target = $region40
      $region39: #{tpu_custom_call.1} parent=5 // pred_region
        %s235 = ssub.s32 %s18, 1
        %s236 = sand.u32 %s45, 1
        %s237 = scalar_lea.sflag [#allocation4], %s236
        %s238 = sand.u32 %s45, 1
        %s239 = smul.addr %s238, 8
        %s240 = scalar_lea.vmem [#allocation3], %s239
        // Predicated region
        $region41: #{tpu_custom_call.1} parent=39 // pred_check
          %p241 = pneg %p58
        $region42: #{tpu_custom_call.1} parent=39 // pred_check_branch
          %243 = sbr.rel (%p241) target = $region44
        $region43: #{tpu_custom_call.1} parent=39 // pred_region
          %244 = dma.done %s237, 128
        $region44: #{tpu_custom_call.1} parent=39 // pred_fallthru
          _
        // Predicated region
        $region45: #{tpu_custom_call.1} parent=39 // pred_check
          %p245 = pneg %p79
        $region46: #{tpu_custom_call.1} parent=39 // pred_check_branch
          %247 = sbr.rel (%p245) target = $region48
        $region47: #{tpu_custom_call.1} parent=39 // pred_region
          %248 = dma.done [#allocation6], 16
        $region48: #{tpu_custom_call.1} parent=39 // pred_fallthru
          _
        %249 = sfence
        %s250 = sand.u32 %s45, 1
        %s251 = scalar_lea.sflag [#allocation4], %s250
        %s252 = sand.u32 %s45, 1
        %s253 = smul.addr %s252, 8
        %s254 = scalar_lea.vmem [#allocation3], %s253
        %p255 = pneg %p58
        %p256 = pneg %p55
        %p257 = pneg %p79
        %p258 = pneg %p76
        %p259 = pneg %p100
        %p260 = pneg %p97
        %p261 = pneg %p121
        %p262 = pneg %p118
        %p263 = pneg %p142
        %p264 = pneg %p139
        %p265 = pneg %p168
        %p266 = pneg %p165
        %s267 = sand.u32 %s155, 1
        %s268 = scalar_lea.sflag [#allocation5], %s267
        %s269 = sand.u32 %s155, 1
        %s270 = scalar_lea.vmem [#allocation8], %s269
        %p271 = scmp.eq.s32.totalorder %s28, 0
        // Predicated region
        $region49: #{tpu_custom_call.1} parent=39 // pred_check
          %p272 = pneg %p271
        $region50: #{tpu_custom_call.1} parent=39 // pred_check_branch
          %274 = sbr.rel (%p272) target = $region52
        $region51: #{tpu_custom_call.1} parent=39 // pred_region
          %275 = vst [vmem:[#allocation2] sm:$0x3] 0.0
          %276 = vst [vmem:[#allocation2 + $0x2] sm:$0x3] 0.0
          %277 = vst [vmem:[#allocation2 + $0x4] sm:$0x3] 0.0
          %278 = vst [vmem:[#allocation2 + $0x6] sm:$0x3] 0.0
        $region52: #{tpu_custom_call.1} parent=39 // pred_fallthru
          _
        %v279 = vld [vmem:[%s240] sm:$0x3]
        %v280 = vld [vmem:[%s240 + $0x2] sm:$0x3]
        %v281 = vld [vmem:[%s240 + $0x4] sm:$0x3]
        %v282 = vld [vmem:[%s240 + $0x6] sm:$0x3]
        %v283 = vld [vmem:[#allocation2] sm:$0x3]
        %v284 = vld [vmem:[#allocation2 + $0x2] sm:$0x3]
        %v285 = vld [vmem:[#allocation2 + $0x4] sm:$0x3]
        %v286 = vld [vmem:[#allocation2 + $0x6] sm:$0x3]
        %v287 = vadd.f32 %v283, %v279
        %v288 = vadd.f32 %v284, %v280
        %v289 = vadd.f32 %v285, %v281
        %v290 = vadd.f32 %v286, %v282
        %291 = vst [vmem:[#allocation2] sm:$0x3] %v287
        %292 = vst [vmem:[#allocation2 + $0x2] sm:$0x3] %v288
        %293 = vst [vmem:[#allocation2 + $0x4] sm:$0x3] %v289
        %294 = vst [vmem:[#allocation2 + $0x6] sm:$0x3] %v290
        // Predicated region
        $region53: #{tpu_custom_call.1} parent=39 // pred_check
          %p295 = pneg %p271
        $region54: #{tpu_custom_call.1} parent=39 // pred_check_branch
          %297 = sbr.rel (%p295) target = $region56
        $region55: #{tpu_custom_call.1} parent=39 // pred_region
          %v298 = vld [vmem:[#allocation2] sm:$0x3]
          %v299 = vld [vmem:[#allocation2 + $0x2] sm:$0x3]
          %v300 = vld [vmem:[#allocation2 + $0x4] sm:$0x3]
          %v301 = vld [vmem:[#allocation2 + $0x6] sm:$0x3]
          %vm302 = vcmask 1041408
          %v303 = vsel %vm302, %v298, 0.0
          %304 = vadd.xlane.f32.xlu0 %v303
          %v305 = vpop.xlane.xlu0 %304
          %v306 = vsel %vm302, %v299, 0.0
          %307 = vadd.xlane.f32.xlu0 %v306
          %v308 = vpop.xlane.xlu0 %307
          %v309 = vsel %vm302, %v300, 0.0
          %310 = vadd.xlane.f32.xlu0 %v309
          %v311 = vpop.xlane.xlu0 %310
          %v312 = vsel %vm302, %v301, 0.0
          %313 = vadd.xlane.f32.xlu0 %v312
          %v314 = vpop.xlane.xlu0 %313
          %v319 = vlaneseq
          %v320 = vand.u32 %v319, 127
          %v321 = vlaneseq
          %v322 = vshrl.u32 %v321, 7
          %v323 = vsub.s32 %v320, %v322
          %v324 = vrot.slane %v305, %v323
          %v325 = vlaneseq
          %v326 = vshrl.u32 %v325, 7
          %v327 = vsub.s32 %v320, %v326
          %v328 = vrot.slane %v308, %v327
          %v329 = vlaneseq
          %v330 = vshrl.u32 %v329, 7
          %v331 = vsub.s32 %v320, %v330
          %v332 = vrot.slane %v311, %v331
          %v333 = vlaneseq
          %v334 = vshrl.u32 %v333, 7
          %v335 = vsub.s32 %v320, %v334
          %v336 = vrot.slane %v314, %v335
          %vm337 = vcmask 1041409
          %v338 = vsel %vm337, %v328, %v324
          %vm339 = vcmask 1042434
          %v340 = vsel %vm339, %v332, %v338
          %vm341 = vcmask 1043459
          %v342 = vsel %vm341, %v336, %v340
          %vm344 = vcmask 11264
          %v345 = vsel %vm344, %v342, 0.0
          %346 = vadd.xlane.f32.xlu0 %v345
          %v347 = vpop.xlane.xlu0 %346
          %v348 = vmul.f32 %v347, 0.00390625
          %v349 = vld [vmem:[%s2] sm:$0xf]
          %v350 = vmul.f32 %v348, %v349
          %vm351 = vcmask 35840
          %v352 = vsel %vm351, %v350, 0.0
          %v353 = vrot.slane %v352, 4
          %v354 = vadd.f32 %v352, %v353
          %v355 = vrot.slane %v354, 2
          %v356 = vadd.f32 %v354, %v355
          %v357 = vrot.slane %v356, 1
          %v358 = vadd.f32 %v356, %v357
          %s359 = sld [smem:[#allocation7 + %s27]]
          %s360 = ssub.f32 0.0, %s359
          %v361 = vstv %s360
          %v362 = vmul.f32 %v361, 1.442695
          %v363 = vpow.pop %v362
          %v364 = vld [vmem:[%s3] sm:$0x1]
          %v365 = vadd.f32 %v358, %v364
          %v366 = vmul.f32 %v363, %v365
          %v367 = vld [vmem:[%s4] sm:$0x1]
          %v368 = vadd.f32 %v366, %v367
          %vm369 = vcmask 32768
          %v370 = vsel %vm369, %v368, -inf
          %371 = vmax.xlane.f32.xlu0 %v370
          %v372 = vpop.xlane.xlu0 %371
          %v373 = vsub.f32 %v368, %v372
          %v374 = vmul.f32 %v373, 1.442695
          %v375 = vpow.pop %v374
          %v376 = vsel %vm369, %v375, 0.0
          %377 = vadd.xlane.f32.xlu0 %v376
          %v378 = vpop.xlane.xlu0 %377
          %v379 = vrcp.pop %v378
          %v380 = vmul.f32 %v375, %v379
          %381 = vst.msk [vmem:[%s270] sm:$0x1] %vm369, %v380
        $region56: #{tpu_custom_call.1} parent=39 // pred_fallthru
          _
        %s382 = sand.u32 %s155, 1
        %s383 = scalar_lea.sflag [#allocation5], %s382
        %s384 = sand.u32 %s155, 1
        %s385 = scalar_lea.vmem [#allocation8], %s384
        // Predicated region
        $region57: #{tpu_custom_call.1} parent=39 // pred_check
          %p386 = pneg %p165
        $region58: #{tpu_custom_call.1} parent=39 // pred_check_branch
          %388 = sbr.rel (%p386) target = $region60
        $region59: #{tpu_custom_call.1} parent=39 // pred_region
          %s390 = ssub.s32 16, 16
          %391 = vsyncadd %s383, %s390
          %s392 = smul.addr %s27, 16
          %s393 = scalar_lea.hbm %s5, %s392
          %s395 = sshll.u32 %s385, 4
          %s396 = int_to_ptr.vmem [resolvable:$true] %s395
          %398 = dma.vmem_to_hbm [thread:$0]  %s396, 16, %s393, %s383
        $region60: #{tpu_custom_call.1} parent=39 // pred_fallthru
          _
      $region40: #{tpu_custom_call.1} parent=5 // pred_fallthru
        _
      %p399 = scmp.le.s32.totalorder 2, %s18
      // Predicated region
      $region61: #{tpu_custom_call.1} parent=5 // pred_check
        %p400 = pneg %p399
      $region62: #{tpu_custom_call.1} parent=5 // pred_check_branch
        %402 = sbr.rel (%p400) target = $region64
      $region63: #{tpu_custom_call.1} parent=5 // pred_region
        %s403 = ssub.s32 %s18, 2
        // Predicated region
        $region65: #{tpu_custom_call.1} parent=63 // pred_check
          %p404 = pneg %p171
        $region66: #{tpu_custom_call.1} parent=63 // pred_check_branch
          %406 = sbr.rel (%p404) target = $region68
        $region67: #{tpu_custom_call.1} parent=63 // pred_region
          %s407 = sand.u32 %s156, 1
          %s408 = scalar_lea.sflag [#allocation5], %s407
          %s409 = sand.u32 %s156, 1
          %s410 = scalar_lea.vmem [#allocation8], %s409
          %411 = dma.done %s408, 16
        $region68: #{tpu_custom_call.1} parent=63 // pred_fallthru
          _
      $region64: #{tpu_custom_call.1} parent=5 // pred_fallthru
        _
    $region6: #{tpu_custom_call.1} parent=1 // loop_footer
      %s22 = sadd.s32 1, %s18
    $region7: #{tpu_custom_call.1} parent=1 // loop_footer_branch
      %17 = sbr.rel target = $region3
    $region8: #{tpu_custom_call.1} parent=1 // loop_exit
      _
    %412 = vsyncpa [#allocation4], 1
    %s413 = scalar_lea.sflag [#allocation4], 1
    %414 = vsyncpa %s413, 1
    %415 = vsyncpa [#allocation5], 1
    %s416 = scalar_lea.sflag [#allocation5], 1
    %417 = vsyncpa %s416, 1
    %418 = vsyncpa [#allocation6], 1
    %s419 = scalar_lea.sflag [#allocation6], 1
    %420 = vsyncpa %s419, 1

</llo_original>
